<compile_context>
chip_gen: v5e
topology: v5e:2x2
jax: 0.10.0
libtpu: 0.0.40
codegen_flags: <defaults>
</compile_context>

<pallas_src>
import functools

import jax
import jax.numpy as jnp
from jax.experimental import pallas as pl
from jax.experimental.pallas import tpu as pltpu


def _attn_map_kernel(q_ref, k_ref, wqt_ref, bq_ref, wk_ref, bk_ref, hmask_ref,
                     out_ref, *, num_heads, normalize_fact):
    # q_ref     : (1, nq, qd)      current batch element's queries
    # k_ref     : (1, qd, HW)      current batch element's feature map (flat)
    # wqt_ref   : (qd, hd)         q_proj weight, pre-transposed
    # bq_ref    : (1, hd)          q_proj bias
    # wk_ref    : (hd, qd)         k_proj (1x1 conv) weight
    # bk_ref    : (hd, 1)          k_proj bias
    # hmask_ref : (n*nq, hd)       0/1 block-diagonal head mask (precomputed)
    # out_ref   : (1, nq, n*HW)    per-head softmaxed attention maps (lane-dense)
    q = q_ref[0]                                    # (nq, qd)
    k = k_ref[0]                                    # (qd, HW)
    nq = q.shape[0]
    hw = k.shape[-1]

    # --- projections: one MXU matmul each ---
    # Linear q-projection (scale folded in once): (q @ Wq^T + bq) * nf
    qp = (jnp.dot(q, wqt_ref[...], preferred_element_type=jnp.float32)
          + bq_ref[...]) * normalize_fact                                # (nq, hd)
    # 1x1-conv k-projection over channels: Wk @ k + bk
    kp = jnp.dot(wk_ref[...], k,
                 preferred_element_type=jnp.float32) + bk_ref[...]       # (hd, HW)

    # --- all heads in one MXU matmul via a block-diagonal LHS ---
    # Row (h*nq + i) holds query i with only head h's channels kept; the
    # single dot below then produces the per-head scores stacked sublane-wise.
    q_bd = jnp.tile(qp, (num_heads, 1)) * hmask_ref[...]                 # (n*nq, hd)
    s = jnp.dot(q_bd, kp, preferred_element_type=jnp.float32)            # (n*nq, HW)

    # --- joint softmax over the flattened spatial axis (all heads at once) ---
    s = s - jnp.max(s, axis=-1, keepdims=True)
    e = jnp.exp(s)
    w = e / jnp.sum(e, axis=-1, keepdims=True)

    # --- per-head, sublane/lane-aligned writeback into lane-dense output ---
    for hh in range(num_heads):                      # static unroll over heads
        out_ref[0, :, hh * hw:(hh + 1) * hw] = (
            w[hh * nq:(hh + 1) * nq, :].astype(out_ref.dtype))


def multi_head_attention_map(q, k, wq, bq, wk, bk, *, num_heads, mask=None):
    """q: [bs, nq, qd], k: [bs, qd, h, w], wq: [hd, qd], bq: [hd],
    wk: [hd, qd, 1, 1] (1x1 conv weight), bk: [hd].
    Returns attention maps [bs, nq, num_heads, h, w]."""
    if mask is not None:
        # TODO(synk): additive pre-softmax mask not wired into the kernel.
        raise NotImplementedError("mask is not supported")

    bs, nq, qd = q.shape
    hd = wq.shape[0]
    h, w = k.shape[-2], k.shape[-1]
    hw = h * w
    assert hd % num_heads == 0
    head_dim = hd // num_heads
    normalize_fact = float(hd / num_heads) ** (-0.5)

    k_flat = k.reshape(bs, qd, hw)          # row-major (h, w) flatten
    wq_t = wq.T                             # (qd, hd): plain NN matmul in-kernel
    wk_2d = wk.reshape(hd, qd)              # 1x1 conv == per-pixel channel matmul
    bq_2d = bq.reshape(1, hd)
    bk_2d = bk.reshape(hd, 1)

    # Precomputed 0/1 block-diagonal head mask: row block hh keeps only the
    # columns of head hh.  Built once on the host side (tiny, read once).
    rows = num_heads * nq
    row_head = (jnp.arange(rows, dtype=jnp.int32) // nq)[:, None]
    col_head = (jnp.arange(hd, dtype=jnp.int32) // head_dim)[None, :]
    head_mask = (row_head == col_head).astype(jnp.float32)       # (n*nq, hd)

    kernel = functools.partial(
        _attn_map_kernel,
        num_heads=num_heads,
        normalize_fact=normalize_fact,
    )

    out = pl.pallas_call(
        kernel,
        out_shape=jax.ShapeDtypeStruct((bs, nq, num_heads * hw), q.dtype),
        grid_spec=pltpu.PrefetchScalarGridSpec(
            num_scalar_prefetch=0,
            grid=(bs,),
            in_specs=[
                pl.BlockSpec((1, nq, qd), lambda b: (b, 0, 0)),   # q
                pl.BlockSpec((1, qd, hw), lambda b: (b, 0, 0)),   # k (flattened)
                pl.BlockSpec((qd, hd), lambda b: (0, 0)),         # Wq^T
                pl.BlockSpec((1, hd), lambda b: (0, 0)),          # bq
                pl.BlockSpec((hd, qd), lambda b: (0, 0)),         # Wk
                pl.BlockSpec((hd, 1), lambda b: (0, 0)),          # bk
                pl.BlockSpec((rows, hd), lambda b: (0, 0)),       # head mask
            ],
            out_specs=pl.BlockSpec((1, nq, num_heads * hw),
                                   lambda b: (b, 0, 0)),
        ),
        compiler_params=pltpu.CompilerParams(
            dimension_semantics=("parallel",)),
    )(q, k_flat, wq_t, bq_2d, wk_2d, bk_2d, head_mask)

    # Free reshape (no data movement): (bs, nq, n*HW) -> (bs, nq, n, h, w).
    # Dropout (p=0.0 / eval) is the identity and is intentionally omitted.
    return out.reshape(bs, nq, num_heads, h, w)


def _reference_forward(q, k, wq, bq, wk, bk, num_heads):
    """Plain-JAX mirror of the PyTorch forward (mask=None, eval mode)."""
    bs, nq, _ = q.shape
    hd = wq.shape[0]
    h, w = k.shape[-2], k.shape[-1]
    c = hd // num_heads
    nf = float(hd / num_heads) ** (-0.5)
    qp = q @ wq.T + bq
    kp = jnp.einsum('oi,bihw->bohw', wk.reshape(hd, -1), k) \
        + bk[None, :, None, None]
    qh = qp.reshape(bs, nq, num_heads, c).transpose(0, 2, 1, 3)
    qh = qh.reshape(bs * num_heads, nq, c)
    kh = kp.reshape(bs * num_heads, c, h * w)
    weights = jnp.einsum('bqc,bck->bqk', qh * nf, kh)
    weights = weights.reshape(bs, num_heads, nq, h, w).transpose(0, 2, 1, 3, 4)
    sm = jax.nn.softmax(weights.reshape(bs, nq, num_heads, h * w), axis=-1)
    return sm.reshape(bs, nq, num_heads, h, w)


if __name__ == "__main__":
    BS, NQ, QD, HD, NH, H, W = 2, 8, 16, 32, 4, 16, 16
    key = jax.random.PRNGKey(0)
    kq, kk, kwq, kbq, kwk, kbk = jax.random.split(key, 6)
    q = jax.random.normal(kq, (BS, NQ, QD), dtype=jnp.float32)
    k = jax.random.normal(kk, (BS, QD, H, W), dtype=jnp.float32)
    wq = 0.1 * jax.random.normal(kwq, (HD, QD), dtype=jnp.float32)
    bq = 0.1 * jax.random.normal(kbq, (HD,), dtype=jnp.float32)
    wk = 0.1 * jax.random.normal(kwk, (HD, QD, 1, 1), dtype=jnp.float32)
    bk = 0.1 * jax.random.normal(kbk, (HD,), dtype=jnp.float32)

    out = multi_head_attention_map(q, k, wq, bq, wk, bk, num_heads=NH)
    jax.block_until_ready(out)

    ref = _reference_forward(q, k, wq, bq, wk, bk, NH)
    assert out.shape == (BS, NQ, NH, H, W), out.shape
    assert jnp.allclose(out, ref, rtol=2e-5, atol=1e-6), \
        float(jnp.max(jnp.abs(out - ref)))
    # every attention map sums to 1 over the spatial axis
    assert jnp.allclose(out.reshape(BS, NQ, NH, -1).sum(-1), 1.0, atol=1e-5)

    print("KERNEL_OK")
</pallas_src>

<mosaic_0001>
module attributes {stable_mosaic.version = 11 : i64} {
  func.func @_attn_map_kernel(%arg0: i32, %arg1: memref<1x8x16xf32, #tpu.memory_space<vmem>>, %arg2: memref<1x16x256xf32, #tpu.memory_space<vmem>>, %arg3: memref<16x32xf32, #tpu.memory_space<vmem>>, %arg4: memref<1x32xf32, #tpu.memory_space<vmem>>, %arg5: memref<32x16xf32, #tpu.memory_space<vmem>>, %arg6: memref<32x1xf32, #tpu.memory_space<vmem>>, %arg7: memref<32x32xf32, #tpu.memory_space<vmem>>, %arg8: memref<1x8x1024xf32, #tpu.memory_space<vmem>>) attributes {dimension_semantics = [#tpu.dimension_semantics<parallel>], iteration_bounds = array<i64: 2>, scalar_prefetch = 0 : i64, scratch_operands = 0 : i64, tpu.core_type = #tpu.core_type<tc>, window_params = [{transform_indices = @transform_0, window_bounds = array<i64: 1, 8, 16>}, {transform_indices = @transform_1, window_bounds = array<i64: 1, 16, 256>}, {pipeline_mode = #tpu.pipeline_mode<synchronous>, transform_indices = @transform_2, window_bounds = array<i64: 16, 32>}, {pipeline_mode = #tpu.pipeline_mode<synchronous>, transform_indices = @transform_3, window_bounds = array<i64: 1, 32>}, {pipeline_mode = #tpu.pipeline_mode<synchronous>, transform_indices = @transform_4, window_bounds = array<i64: 32, 16>}, {pipeline_mode = #tpu.pipeline_mode<synchronous>, transform_indices = @transform_5, window_bounds = array<i64: 32, 1>}, {pipeline_mode = #tpu.pipeline_mode<synchronous>, transform_indices = @transform_6, window_bounds = array<i64: 32, 32>}, {transform_indices = @transform_7, window_bounds = array<i64: 1, 8, 1024>}]} {
    %c0 = arith.constant 0 : index
    %c0_0 = arith.constant 0 : index
    %c0_1 = arith.constant 0 : index
    %0 = vector.load %arg1[%c0, %c0_0, %c0_1] : memref<1x8x16xf32, #tpu.memory_space<vmem>>, vector<1x8x16xf32>
    %1 = vector.shape_cast %0 : vector<1x8x16xf32> to vector<8x16xf32>
    %c0_2 = arith.constant 0 : index
    %c0_3 = arith.constant 0 : index
    %c0_4 = arith.constant 0 : index
    %2 = vector.load %arg2[%c0_2, %c0_3, %c0_4] : memref<1x16x256xf32, #tpu.memory_space<vmem>>, vector<1x16x256xf32>
    %3 = vector.shape_cast %2 : vector<1x16x256xf32> to vector<16x256xf32>
    %c0_5 = arith.constant 0 : index
    %c0_6 = arith.constant 0 : index
    %4 = vector.load %arg3[%c0_5, %c0_6] : memref<16x32xf32, #tpu.memory_space<vmem>>, vector<16x32xf32>
    %cst = arith.constant dense<0.000000e+00> : vector<8x32xf32>
    %5 = tpu.matmul %1, %4, %cst {dimension_numbers = #tpu.dot_dimension_numbers<[1], [0], [0], [1], [0, 0, 1, 1], [], []>} : vector<8x16xf32>, vector<16x32xf32>, vector<8x32xf32> -> vector<8x32xf32>
    %c0_7 = arith.constant 0 : index
    %c0_8 = arith.constant 0 : index
    %6 = vector.load %arg4[%c0_7, %c0_8] : memref<1x32xf32, #tpu.memory_space<vmem>>, vector<1x32xf32>
    %7 = vector.broadcast %6 : vector<1x32xf32> to vector<8x32xf32>
    %8 = arith.addf %5, %7 : vector<8x32xf32>
    %cst_9 = arith.constant 0.353553385 : f32
    %9 = vector.broadcast %cst_9 : f32 to vector<8x32xf32>
    %10 = arith.mulf %8, %9 : vector<8x32xf32>
    %c0_10 = arith.constant 0 : index
    %c0_11 = arith.constant 0 : index
    %11 = vector.load %arg5[%c0_10, %c0_11] : memref<32x16xf32, #tpu.memory_space<vmem>>, vector<32x16xf32>
    %cst_12 = arith.constant dense<0.000000e+00> : vector<32x256xf32>
    %12 = tpu.matmul %11, %3, %cst_12 {dimension_numbers = #tpu.dot_dimension_numbers<[1], [0], [0], [1], [0, 0, 1, 1], [], []>} : vector<32x16xf32>, vector<16x256xf32>, vector<32x256xf32> -> vector<32x256xf32>
    %c0_13 = arith.constant 0 : index
    %c0_14 = arith.constant 0 : index
    %13 = vector.load %arg6[%c0_13, %c0_14] : memref<32x1xf32, #tpu.memory_space<vmem>>, vector<32x1xf32>
    %14 = vector.broadcast %13 : vector<32x1xf32> to vector<32x256xf32>
    %15 = arith.addf %12, %14 : vector<32x256xf32>
    %16 = tpu.concatenate %10, %10, %10, %10 in 0 : vector<8x32xf32>, vector<8x32xf32>, vector<8x32xf32>, vector<8x32xf32> -> vector<32x32xf32>
    %c0_15 = arith.constant 0 : index
    %c0_16 = arith.constant 0 : index
    %17 = vector.load %arg7[%c0_15, %c0_16] : memref<32x32xf32, #tpu.memory_space<vmem>>, vector<32x32xf32>
    %18 = arith.mulf %16, %17 : vector<32x32xf32>
    %cst_17 = arith.constant dense<0.000000e+00> : vector<32x256xf32>
    %19 = tpu.matmul %18, %15, %cst_17 {dimension_numbers = #tpu.dot_dimension_numbers<[1], [0], [0], [1], [0, 0, 1, 1], [], []>} : vector<32x32xf32>, vector<32x256xf32>, vector<32x256xf32> -> vector<32x256xf32>
    %cst_18 = arith.constant dense<0xFF800000> : vector<32xf32>
    %20 = vector.multi_reduction <maximumf>, %19, %cst_18 [1] : vector<32x256xf32> to vector<32xf32>
    %21 = vector.shape_cast %20 : vector<32xf32> to vector<32x1xf32>
    %22 = vector.broadcast %21 : vector<32x1xf32> to vector<32x256xf32>
    %23 = arith.subf %19, %22 : vector<32x256xf32>
    %24 = math.exp %23 : vector<32x256xf32>
    %cst_19 = arith.constant dense<0.000000e+00> : vector<32xf32>
    %25 = vector.multi_reduction <add>, %24, %cst_19 [1] : vector<32x256xf32> to vector<32xf32>
    %26 = vector.shape_cast %25 : vector<32xf32> to vector<32x1xf32>
    %27 = vector.broadcast %26 : vector<32x1xf32> to vector<32x256xf32>
    %28 = arith.divf %24, %27 : vector<32x256xf32>
    %29 = vector.extract_strided_slice %28 {offsets = [0, 0], sizes = [8, 256], strides = [1, 1]} : vector<32x256xf32> to vector<8x256xf32>
    %c0_20 = arith.constant 0 : index
    %c0_21 = arith.constant 0 : index
    %c0_22 = arith.constant 0 : index
    %30 = vector.load %arg8[%c0_20, %c0_21, %c0_22] : memref<1x8x1024xf32, #tpu.memory_space<vmem>>, vector<1x8x256xf32>
    %31 = vector.shape_cast %30 : vector<1x8x256xf32> to vector<8x256xf32>
    %32 = vector.shape_cast %29 : vector<8x256xf32> to vector<1x8x256xf32>
    tpu.vector_store %arg8[%c0_20, %c0_21, %c0_22], %32 {strides = array<i32>} : memref<1x8x1024xf32, #tpu.memory_space<vmem>>, vector<1x8x256xf32>,
    %33 = vector.extract_strided_slice %28 {offsets = [8, 0], sizes = [8, 256], strides = [1, 1]} : vector<32x256xf32> to vector<8x256xf32>
    %c0_23 = arith.constant 0 : index
    %c0_24 = arith.constant 0 : index
    %c256 = arith.constant 256 : index
    %34 = vector.load %arg8[%c0_23, %c0_24, %c256] : memref<1x8x1024xf32, #tpu.memory_space<vmem>>, vector<1x8x256xf32>
    %35 = vector.shape_cast %34 : vector<1x8x256xf32> to vector<8x256xf32>
    %36 = vector.shape_cast %33 : vector<8x256xf32> to vector<1x8x256xf32>
    tpu.vector_store %arg8[%c0_23, %c0_24, %c256], %36 {strides = array<i32>} : memref<1x8x1024xf32, #tpu.memory_space<vmem>>, vector<1x8x256xf32>,
    %37 = vector.extract_strided_slice %28 {offsets = [16, 0], sizes = [8, 256], strides = [1, 1]} : vector<32x256xf32> to vector<8x256xf32>
    %c0_25 = arith.constant 0 : index
    %c0_26 = arith.constant 0 : index
    %c512 = arith.constant 512 : index
    %38 = vector.load %arg8[%c0_25, %c0_26, %c512] : memref<1x8x1024xf32, #tpu.memory_space<vmem>>, vector<1x8x256xf32>
    %39 = vector.shape_cast %38 : vector<1x8x256xf32> to vector<8x256xf32>
    %40 = vector.shape_cast %37 : vector<8x256xf32> to vector<1x8x256xf32>
    tpu.vector_store %arg8[%c0_25, %c0_26, %c512], %40 {strides = array<i32>} : memref<1x8x1024xf32, #tpu.memory_space<vmem>>, vector<1x8x256xf32>,
    %41 = vector.extract_strided_slice %28 {offsets = [24, 0], sizes = [8, 256], strides = [1, 1]} : vector<32x256xf32> to vector<8x256xf32>
    %c0_27 = arith.constant 0 : index
    %c0_28 = arith.constant 0 : index
    %c768 = arith.constant 768 : index
    %42 = vector.load %arg8[%c0_27, %c0_28, %c768] : memref<1x8x1024xf32, #tpu.memory_space<vmem>>, vector<1x8x256xf32>
    %43 = vector.shape_cast %42 : vector<1x8x256xf32> to vector<8x256xf32>
    %44 = vector.shape_cast %41 : vector<8x256xf32> to vector<1x8x256xf32>
    tpu.vector_store %arg8[%c0_27, %c0_28, %c768], %44 {strides = array<i32>} : memref<1x8x1024xf32, #tpu.memory_space<vmem>>, vector<1x8x256xf32>,
    return
  }
  func.func @transform_0(%arg0: i32) -> (i32, i32, i32) {
    %c0_i32 = arith.constant 0 : i32
    %c0_i32_0 = arith.constant 0 : i32
    %c0_i32_1 = arith.constant 0 : i32
    return %arg0, %c0_i32, %c0_i32_0 : i32, i32, i32
  }
  func.func @transform_1(%arg0: i32) -> (i32, i32, i32) {
    %c0_i32 = arith.constant 0 : i32
    %c0_i32_0 = arith.constant 0 : i32
    %c0_i32_1 = arith.constant 0 : i32
    return %arg0, %c0_i32, %c0_i32_0 : i32, i32, i32
  }
  func.func @transform_2(%arg0: i32) -> (i32, i32) {
    %c0_i32 = arith.constant 0 : i32
    %c0_i32_0 = arith.constant 0 : i32
    %c0_i32_1 = arith.constant 0 : i32
    return %c0_i32, %c0_i32_0 : i32, i32
  }
  func.func @transform_3(%arg0: i32) -> (i32, i32) {
    %c0_i32 = arith.constant 0 : i32
    %c0_i32_0 = arith.constant 0 : i32
    %c0_i32_1 = arith.constant 0 : i32
    return %c0_i32, %c0_i32_0 : i32, i32
  }
  func.func @transform_4(%arg0: i32) -> (i32, i32) {
    %c0_i32 = arith.constant 0 : i32
    %c0_i32_0 = arith.constant 0 : i32
    %c0_i32_1 = arith.constant 0 : i32
    return %c0_i32, %c0_i32_0 : i32, i32
  }
  func.func @transform_5(%arg0: i32) -> (i32, i32) {
    %c0_i32 = arith.constant 0 : i32
    %c0_i32_0 = arith.constant 0 : i32
    %c0_i32_1 = arith.constant 0 : i32
    return %c0_i32, %c0_i32_0 : i32, i32
  }
  func.func @transform_6(%arg0: i32) -> (i32, i32) {
    %c0_i32 = arith.constant 0 : i32
    %c0_i32_0 = arith.constant 0 : i32
    %c0_i32_1 = arith.constant 0 : i32
    return %c0_i32, %c0_i32_0 : i32, i32
  }
  func.func @transform_7(%arg0: i32) -> (i32, i32, i32) {
    %c0_i32 = arith.constant 0 : i32
    %c0_i32_0 = arith.constant 0 : i32
    %c0_i32_1 = arith.constant 0 : i32
    return %arg0, %c0_i32, %c0_i32_0 : i32, i32, i32
  }
}

</mosaic_0001>

<llo_original>
// kernel: tpu_custom_call.1
$region0: #{tpu_custom_call.1}
  #allocation0 [shape = 'u32[]', space=smem, size = 0x4, offset = 0x4, fixed_abs, tag = 'smem constant byte address 0x4 - core index']
  #allocation1 [shape = 'u32[72,128]{1,0:T(1,128)}', space=vmem, size = 0x9000, scoped, tag = 'internal scratch']
  %s0 = inlined_call_operand.vmem [shape: f32[2,8,16], index: 0, kind: input, shape index: {}]
  %s1 = inlined_call_operand.vmem [shape: f32[2,16,256], index: 1, kind: input, shape index: {}]
  %s2 = inlined_call_operand.hbm [shape: f32[16,32], index: 2, kind: input, shape index: {}]
  %s3 = inlined_call_operand.vmem [shape: f32[1,32], index: 3, kind: input, shape index: {}]
  %s4 = inlined_call_operand.vmem [shape: f32[32,16], index: 4, kind: input, shape index: {}]
  %s5 = inlined_call_operand.vmem [shape: f32[32,1], index: 5, kind: input, shape index: {}]
  %s6 = inlined_call_operand.hbm [shape: f32[32,32], index: 6, kind: input, shape index: {}]
  %s7 = inlined_call_operand.hbm [shape: f32[2,8,1024], index: 7, kind: output, shape index: {}]
  %s8 = sld [smem:[#allocation0]]
  $region69: #{tpu_custom_call.1} parent=0
    _
  %s10 = ssub.s32 1, %s8
  %s11 = scalar_select 0, %s10, %s8
  $region1: #{tpu_custom_call.1} parent=0
    #allocation2 [shape = 'u8[8192]{0}', space=vmem, size = 0x2000, scoped, tag = 'input window, operand 2, single buffered']
    #allocation3 [shape = 's32[2]{0}', space=sflag, size = 0x8, scoped, tag = 'scoped memory for tpu_custom_call.1']
    #allocation4 [shape = 's32[2]{0}', space=sflag, size = 0x8, scoped, tag = 'scoped memory for tpu_custom_call.1']
    #allocation5 [shape = 'u8[16384]{0}', space=vmem, size = 0x4000, scoped, tag = 'input window, operand 6, single buffered']
    #allocation6 [shape = 's32[1]{0}', space=sflag, size = 0x4, scoped, tag = 'scoped memory for tpu_custom_call.1']
    #allocation7 [shape = 'u8[65536]{0}', space=vmem, size = 0x10000, scoped, tag = 'output window, operand 0']
    %12 = vsyncpa [#allocation3], 0
    %13 = vsyncpa [#allocation6], 0
    %14 = vsyncpa [#allocation4], 0
    %s15 = scalar_lea.sflag [#allocation4], 1
    %16 = vsyncpa %s15, 0
    loop: start=0, step=1, limit=4
    $region2: #{tpu_custom_call.1} parent=1 // loop_pre_header
      _
    $region3: #{tpu_custom_call.1} parent=1 // loop_header
      %s18 = sphi 0, %s22
      %p19 = scmp.ge.s32.totalorder %s18, 4
      %s28 = sphi 0, %s30
      %s31 = sphi 0, %s28
      %s32 = sphi 0, %s31
      %s48 = sphi 0, %s32
      %s54 = sphi 0, %s56
      %s57 = sphi 0, %s54
      %s58 = sphi 0, %s57
      %s74 = sphi 0, %s58
      %s78 = sphi 0, %s78
      %s80 = sphi 0, %s78
      %s81 = sphi 0, %s80
      %s95 = sphi 0, %s81
      %s99 = sphi 0, %s99
      %s101 = sphi 0, %s99
      %s102 = sphi 0, %s101
      %s116 = sphi 0, %s102
      %s120 = sphi 0, %s120
      %s122 = sphi 0, %s120
      %s123 = sphi 0, %s122
      %s137 = sphi 0, %s123
      %s141 = sphi 0, %s141
      %s143 = sphi 0, %s141
      %s144 = sphi 0, %s143
      %s158 = sphi 0, %s144
      %s162 = sphi 0, %s162
      %s164 = sphi 0, %s162
      %s165 = sphi 0, %s164
      %s179 = sphi 0, %s165
      %s185 = sphi 0, %s187
      %s188 = sphi 0, %s185
      %s189 = sphi 0, %s188
      %s205 = sphi 0, %s189
    $region4: #{tpu_custom_call.1} parent=1 // loop_header_branch
      %21 = sbr.rel (%p19) target = $region8
    $region5: #{tpu_custom_call.1} parent=1 // loop_body
      %s23 = ssub.s32 %s18, 1
      %s24 = ssub.s32 %s18, 2
      %s25 = sadd.s32 %s18, 1
      %s26 = ssub.s32 %s18, %s25
      %p27 = scmp.eq.s32.totalorder %s26, 0
      %s29 = sadd.s32 %s28, 1
      %s30 = scalar_select %p27, %s28, %s29
      %p33 = pneg %p27
      %p34 = scmp.eq.s32.totalorder %s18, 1
      %p35 = por %p33, %p34
      %p36 = scmp.ne.s32.totalorder %s28, %s31
      %p37 = scmp.eq.s32.totalorder %s18, 0
      %p38 = por %p36, %p37
      %p39 = scmp.ne.s32.totalorder %s28, %s31
      %p40 = scmp.eq.s32.totalorder %s23, 1
      %p41 = por %p39, %p40
      %p42 = scmp.ne.s32.totalorder %s31, %s32
      %p43 = scmp.eq.s32.totalorder %s23, 0
      %p44 = por %p42, %p43
      %p45 = scmp.ne.s32.totalorder %s31, %s32
      %p46 = scmp.eq.s32.totalorder %s24, 1
      %p47 = por %p45, %p46
      %p49 = scmp.ne.s32.totalorder %s32, %s48
      %p50 = scmp.eq.s32.totalorder %s24, 0
      %p51 = por %p49, %p50
      %s52 = ssub.s32 %s18, %s25
      %p53 = scmp.eq.s32.totalorder %s52, 0
      %s55 = sadd.s32 %s54, 1
      %s56 = scalar_select %p53, %s54, %s55
      %p59 = pneg %p53
      %p60 = scmp.eq.s32.totalorder %s18, 1
      %p61 = por %p59, %p60
      %p62 = scmp.ne.s32.totalorder %s54, %s57
      %p63 = scmp.eq.s32.totalorder %s18, 0
      %p64 = por %p62, %p63
      %p65 = scmp.ne.s32.totalorder %s54, %s57
      %p66 = scmp.eq.s32.totalorder %s23, 1
      %p67 = por %p65, %p66
      %p68 = scmp.ne.s32.totalorder %s57, %s58
      %p69 = scmp.eq.s32.totalorder %s23, 0
      %p70 = por %p68, %p69
      %p71 = scmp.ne.s32.totalorder %s57, %s58
      %p72 = scmp.eq.s32.totalorder %s24, 1
      %p73 = por %p71, %p72
      %p75 = scmp.ne.s32.totalorder %s58, %s74
      %p76 = scmp.eq.s32.totalorder %s24, 0
      %p77 = por %p75, %p76
      %s79 = sadd.s32 %s78, 1
      %p82 = scmp.eq.s32.totalorder %s18, 1
      %p83 = scmp.ne.s32.totalorder %s78, %s80
      %p84 = scmp.eq.s32.totalorder %s18, 0
      %p85 = por %p83, %p84
      %p86 = scmp.ne.s32.totalorder %s78, %s80
      %p87 = scmp.eq.s32.totalorder %s23, 1
      %p88 = por %p86, %p87
      %p89 = scmp.ne.s32.totalorder %s80, %s81
      %p90 = scmp.eq.s32.totalorder %s23, 0
      %p91 = por %p89, %p90
      %p92 = scmp.ne.s32.totalorder %s80, %s81
      %p93 = scmp.eq.s32.totalorder %s24, 1
      %p94 = por %p92, %p93
      %p96 = scmp.ne.s32.totalorder %s81, %s95
      %p97 = scmp.eq.s32.totalorder %s24, 0
      %p98 = por %p96, %p97
      %s100 = sadd.s32 %s99, 1
      %p103 = scmp.eq.s32.totalorder %s18, 1
      %p104 = scmp.ne.s32.totalorder %s99, %s101
      %p105 = scmp.eq.s32.totalorder %s18, 0
      %p106 = por %p104, %p105
      %p107 = scmp.ne.s32.totalorder %s99, %s101
      %p108 = scmp.eq.s32.totalorder %s23, 1
      %p109 = por %p107, %p108
      %p110 = scmp.ne.s32.totalorder %s101, %s102
      %p111 = scmp.eq.s32.totalorder %s23, 0
      %p112 = por %p110, %p111
      %p113 = scmp.ne.s32.totalorder %s101, %s102
      %p114 = scmp.eq.s32.totalorder %s24, 1
      %p115 = por %p113, %p114
      %p117 = scmp.ne.s32.totalorder %s102, %s116
      %p118 = scmp.eq.s32.totalorder %s24, 0
      %p119 = por %p117, %p118
      %s121 = sadd.s32 %s120, 1
      %p124 = scmp.eq.s32.totalorder %s18, 1
      %p125 = scmp.ne.s32.totalorder %s120, %s122
      %p126 = scmp.eq.s32.totalorder %s18, 0
      %p127 = por %p125, %p126
      %p128 = scmp.ne.s32.totalorder %s120, %s122
      %p129 = scmp.eq.s32.totalorder %s23, 1
      %p130 = por %p128, %p129
      %p131 = scmp.ne.s32.totalorder %s122, %s123
      %p132 = scmp.eq.s32.totalorder %s23, 0
      %p133 = por %p131, %p132
      %p134 = scmp.ne.s32.totalorder %s122, %s123
      %p135 = scmp.eq.s32.totalorder %s24, 1
      %p136 = por %p134, %p135
      %p138 = scmp.ne.s32.totalorder %s123, %s137
      %p139 = scmp.eq.s32.totalorder %s24, 0
      %p140 = por %p138, %p139
      %s142 = sadd.s32 %s141, 1
      %p145 = scmp.eq.s32.totalorder %s18, 1
      %p146 = scmp.ne.s32.totalorder %s141, %s143
      %p147 = scmp.eq.s32.totalorder %s18, 0
      %p148 = por %p146, %p147
      %p149 = scmp.ne.s32.totalorder %s141, %s143
      %p150 = scmp.eq.s32.totalorder %s23, 1
      %p151 = por %p149, %p150
      %p152 = scmp.ne.s32.totalorder %s143, %s144
      %p153 = scmp.eq.s32.totalorder %s23, 0
      %p154 = por %p152, %p153
      %p155 = scmp.ne.s32.totalorder %s143, %s144
      %p156 = scmp.eq.s32.totalorder %s24, 1
      %p157 = por %p155, %p156
      %p159 = scmp.ne.s32.totalorder %s144, %s158
      %p160 = scmp.eq.s32.totalorder %s24, 0
      %p161 = por %p159, %p160
      %s163 = sadd.s32 %s162, 1
      %p166 = scmp.eq.s32.totalorder %s18, 1
      %p167 = scmp.ne.s32.totalorder %s162, %s164
      %p168 = scmp.eq.s32.totalorder %s18, 0
      %p169 = por %p167, %p168
      %p170 = scmp.ne.s32.totalorder %s162, %s164
      %p171 = scmp.eq.s32.totalorder %s23, 1
      %p172 = por %p170, %p171
      %p173 = scmp.ne.s32.totalorder %s164, %s165
      %p174 = scmp.eq.s32.totalorder %s23, 0
      %p175 = por %p173, %p174
      %p176 = scmp.ne.s32.totalorder %s164, %s165
      %p177 = scmp.eq.s32.totalorder %s24, 1
      %p178 = por %p176, %p177
      %p180 = scmp.ne.s32.totalorder %s165, %s179
      %p181 = scmp.eq.s32.totalorder %s24, 0
      %p182 = por %p180, %p181
      %s183 = ssub.s32 %s18, %s25
      %p184 = scmp.eq.s32.totalorder %s183, 0
      %s186 = sadd.s32 %s185, 1
      %s187 = scalar_select %p184, %s185, %s186
      %p190 = pneg %p184
      %p191 = scmp.eq.s32.totalorder %s18, 1
      %p192 = por %p190, %p191
      %p193 = scmp.ne.s32.totalorder %s185, %s188
      %p194 = scmp.eq.s32.totalorder %s18, 0
      %p195 = por %p193, %p194
      %p196 = scmp.ne.s32.totalorder %s185, %s188
      %p197 = scmp.eq.s32.totalorder %s23, 1
      %p198 = por %p196, %p197
      %p199 = scmp.ne.s32.totalorder %s188, %s189
      %p200 = scmp.eq.s32.totalorder %s23, 0
      %p201 = por %p199, %p200
      %p202 = scmp.ne.s32.totalorder %s188, %s189
      %p203 = scmp.eq.s32.totalorder %s24, 1
      %p204 = por %p202, %p203
      %p206 = scmp.ne.s32.totalorder %s189, %s205
      %p207 = scmp.eq.s32.totalorder %s24, 0
      %p208 = por %p206, %p207
      %p209 = scmp.le.s32.totalorder 1, %s18
      %p210 = scmp.lt.s32.totalorder %s18, 3
      %p211 = pnand %p209, %p210
      %p212 = pneg %p211
      // Predicated region
      $region9: #{tpu_custom_call.1} parent=5 // pred_check
        _
      $region10: #{tpu_custom_call.1} parent=5 // pred_check_branch
        %214 = sbr.rel (%p211) target = $region12
      $region11: #{tpu_custom_call.1} parent=5 // pred_region
        %s215 = ssub.s32 %s18, 1
        // Predicated region
        $region13: #{tpu_custom_call.1} parent=11 // pred_check
          %p216 = pneg %p91
        $region14: #{tpu_custom_call.1} parent=11 // pred_check_branch
          %218 = sbr.rel (%p216) target = $region16
        $region15: #{tpu_custom_call.1} parent=11 // pred_region
          %220 = vsyncadd [#allocation3], 0
          %s221 = sshll.u32 %s2, 4
          %s222 = int_to_ptr.hbm [resolvable:$true] %s221
          %s223 = sshll.u32 [#allocation2], 4
          %s224 = int_to_ptr.vmem [resolvable:$true] %s223
          %229 = dma.hbm_to_vmem [thread:$0]  %s222, 256, %s224, [#allocation3], 128, 128, 8
        $region16: #{tpu_custom_call.1} parent=11 // pred_fallthru
          _
        // Predicated region
        $region17: #{tpu_custom_call.1} parent=11 // pred_check
          %p230 = pneg %p112
        $region18: #{tpu_custom_call.1} parent=11 // pred_check_branch
          %232 = sbr.rel (%p230) target = $region20
        $region19: #{tpu_custom_call.1} parent=11 // pred_region
          _
        $region20: #{tpu_custom_call.1} parent=11 // pred_fallthru
          _
        // Predicated region
        $region21: #{tpu_custom_call.1} parent=11 // pred_check
          %p233 = pneg %p133
        $region22: #{tpu_custom_call.1} parent=11 // pred_check_branch
          %235 = sbr.rel (%p233) target = $region24
        $region23: #{tpu_custom_call.1} parent=11 // pred_region
          _
        $region24: #{tpu_custom_call.1} parent=11 // pred_fallthru
          _
        // Predicated region
        $region25: #{tpu_custom_call.1} parent=11 // pred_check
          %p236 = pneg %p154
        $region26: #{tpu_custom_call.1} parent=11 // pred_check_branch
          %238 = sbr.rel (%p236) target = $region28
        $region27: #{tpu_custom_call.1} parent=11 // pred_region
          _
        $region28: #{tpu_custom_call.1} parent=11 // pred_fallthru
          _
        // Predicated region
        $region29: #{tpu_custom_call.1} parent=11 // pred_check
          %p239 = pneg %p175
        $region30: #{tpu_custom_call.1} parent=11 // pred_check_branch
          %241 = sbr.rel (%p239) target = $region32
        $region31: #{tpu_custom_call.1} parent=11 // pred_region
          %243 = vsyncadd [#allocation6], 0
          %s244 = sshll.u32 %s6, 4
          %s245 = int_to_ptr.hbm [resolvable:$true] %s244
          %s246 = sshll.u32 [#allocation5], 4
          %s247 = int_to_ptr.vmem [resolvable:$true] %s246
          %252 = dma.hbm_to_vmem [thread:$0]  %s245, 512, %s247, [#allocation6], 128, 128, 8
        $region32: #{tpu_custom_call.1} parent=11 // pred_fallthru
          _
      $region12: #{tpu_custom_call.1} parent=5 // pred_fallthru
        _
      %p253 = scmp.lt.s32.totalorder %s18, 2
      // Predicated region
      $region33: #{tpu_custom_call.1} parent=5 // pred_check
        %p254 = pneg %p253
      $region34: #{tpu_custom_call.1} parent=5 // pred_check_branch
        %256 = sbr.rel (%p254) target = $region36
      $region35: #{tpu_custom_call.1} parent=5 // pred_region
        // Predicated region
        $region37: #{tpu_custom_call.1} parent=35 // pred_check
          %p257 = pneg %p38
        $region38: #{tpu_custom_call.1} parent=35 // pred_check_branch
          %259 = sbr.rel (%p257) target = $region40
        $region39: #{tpu_custom_call.1} parent=35 // pred_region
          %p260 = scmp.lt.s32.totalorder %s18, 1
          %s261 = scalar_select %p260, %s18, 1
          %s262 = smul.addr %s261, 8
          %s263 = scalar_lea.vmem %s0, %s262
        $region40: #{tpu_custom_call.1} parent=35 // pred_fallthru
          _
        // Predicated region
        $region41: #{tpu_custom_call.1} parent=35 // pred_check
          %p264 = pneg %p64
        $region42: #{tpu_custom_call.1} parent=35 // pred_check_branch
          %266 = sbr.rel (%p264) target = $region44
        $region43: #{tpu_custom_call.1} parent=35 // pred_region
          %p267 = scmp.lt.s32.totalorder %s18, 1
          %s268 = scalar_select %p267, %s18, 1
          %s269 = smul.addr %s268, 4
          %s270 = smul.addr %s269, 8
          %s271 = scalar_lea.vmem %s1, %s270
        $region44: #{tpu_custom_call.1} parent=35 // pred_fallthru
          _
      $region36: #{tpu_custom_call.1} parent=5 // pred_fallthru
        _
      %p272 = scmp.le.s32.totalorder 1, %s18
      %p273 = scmp.lt.s32.totalorder %s18, 3
      %p274 = pnand %p272, %p273
      %p275 = pneg %p274
      // Predicated region
      $region45: #{tpu_custom_call.1} parent=5 // pred_check
        _
      $region46: #{tpu_custom_call.1} parent=5 // pred_check_branch
        %277 = sbr.rel (%p274) target = $region48
      $region47: #{tpu_custom_call.1} parent=5 // pred_region
        %s278 = ssub.s32 %s18, 1
        // Predicated region
        $region49: #{tpu_custom_call.1} parent=47 // pred_check
          %p279 = pneg %p91
        $region50: #{tpu_custom_call.1} parent=47 // pred_check_branch
          %281 = sbr.rel (%p279) target = $region52
        $region51: #{tpu_custom_call.1} parent=47 // pred_region
          %283 = dma.done [#allocation3], 256
        $region52: #{tpu_custom_call.1} parent=47 // pred_fallthru
          _
        // Predicated region
        $region53: #{tpu_custom_call.1} parent=47 // pred_check
          %p284 = pneg %p175
        $region54: #{tpu_custom_call.1} parent=47 // pred_check_branch
          %286 = sbr.rel (%p284) target = $region56
        $region55: #{tpu_custom_call.1} parent=47 // pred_region
          %288 = dma.done [#allocation6], 512
        $region56: #{tpu_custom_call.1} parent=47 // pred_fallthru
          _
        %p289 = scmp.lt.s32.totalorder %s23, 1
        %s290 = scalar_select %p289, %s23, 1
        %s291 = smul.addr %s290, 8
        %s292 = scalar_lea.vmem %s0, %s291
        %p293 = pneg %p44
        %p294 = pneg %p41
        %p295 = scmp.lt.s32.totalorder %s23, 1
        %s296 = scalar_select %p295, %s23, 1
        %s297 = smul.addr %s296, 4
        %s298 = smul.addr %s297, 8
        %s299 = scalar_lea.vmem %s1, %s298
        %p300 = pneg %p70
        %p301 = pneg %p67
        %p302 = pneg %p91
        %p303 = pneg %p88
        %p304 = pneg %p112
        %p305 = pneg %p109
        %p306 = pneg %p133
        %p307 = pneg %p130
        %p308 = pneg %p154
        %p309 = pneg %p151
        %p310 = pneg %p175
        %p311 = pneg %p172
        %p312 = pneg %p201
        %p313 = pneg %p198
        %s314 = sand.u32 %s188, 1
        %s315 = scalar_lea.sflag [#allocation4], %s314
        %s316 = sand.u32 %s188, 1
        %s317 = smul.addr %s316, 64
        %s318 = scalar_lea.vmem [#allocation7], %s317
        %p319 = scmp.lt.s32.totalorder %s23, 1
        %s320 = scalar_select %p319, %s23, 1
        %s321 = smul.addr %s320, 8
        %s322 = scalar_lea.vmem %s0, %s321
        %p323 = scmp.lt.s32.totalorder %s23, 1
        %s324 = scalar_select %p323, %s23, 1
        %s325 = smul.addr %s324, 4
        %s326 = smul.addr %s325, 8
        %s327 = scalar_lea.vmem %s1, %s326
        %v328 = vld [vmem:[%s322] sm:$0xff]
        %v329 = vld [vmem:[%s327] sm:$0xff]
        %v330 = vld [vmem:[%s327 + $0x8] sm:$0xff]
        %v331 = vld [vmem:[%s327 + $0x10] sm:$0xff]
        %v332 = vld [vmem:[%s327 + $0x18] sm:$0xff]
        %v333 = vld [vmem:[#allocation2] sm:$0xff]
        %v334 = vld [vmem:[#allocation2 + $0x8] sm:$0xff]
        %v335 = vld [vmem:[%s3] sm:$0x1]
        %v337 = vperm.slane %v335, 0
        %vm339 = vcmask 130048
        %v341 = vsel %vm339, %v328, 0
        %343 = vmatpush.msra.mxu0 0.0
        %344 = vmatpush.msra.mxu0 0.0
        %345 = vmatpush.msra.mxu0 0.0
        %346 = vmatpush.msra.mxu0 0.0
        %347 = vmatpush.msra.mxu0 0.0
        %348 = vmatpush.msra.mxu0 0.0
        %349 = vmatpush.msra.mxu0 0.0
        %350 = vmatpush.msra.mxu0 0.0
        %351 = vmatpush.msra.mxu0 0.0
        %352 = vmatpush.msra.mxu0 0.0
        %353 = vmatpush.msra.mxu0 0.0
        %354 = vmatpush.msra.mxu0 0.0
        %355 = vmatpush.msra.mxu0 0.0
        %356 = vmatpush.msra.mxu0 0.0
        %357 = vmatpush.msra.mxu0 %v334
        %358 = vmatpush.msra.mxu0 %v333
        %359 = vmatmul.f32.gmra.mxu0 %v341
        %v360 = vpop.f32.mrf.mxu0
        %v361 = vadd.f32 %v337, %v360
        %362 = vdwg.mxu0
        %v363 = vmul.f32 %v361, 0.35355338
        %v364 = vld [vmem:[%s4] sm:$0xff]
        %v365 = vld [vmem:[%s4 + $0x8] sm:$0xff]
        %v366 = vld [vmem:[%s4 + $0x10] sm:$0xff]
        %v367 = vld [vmem:[%s4 + $0x18] sm:$0xff]
        %v368 = vld [vmem:[%s5] sm:$0xff]
        %v369 = vld [vmem:[%s5 + $0x8] sm:$0xff]
        %v370 = vld [vmem:[%s5 + $0x10] sm:$0xff]
        %v371 = vld [vmem:[%s5 + $0x18] sm:$0xff]
        %373 = vset.pattern.permute.xlu0 0
        %374 = vperm.xlu0 %373, %v368
        %v375 = vpop.permute.xlu0 %374
        %378 = vset.pattern.permute.xlu0 0
        %379 = vperm.xlu0 %378, %v369
        %v380 = vpop.permute.xlu0 %379
        %383 = vset.pattern.permute.xlu0 0
        %384 = vperm.xlu0 %383, %v370
        %v385 = vpop.permute.xlu0 %384
        %388 = vset.pattern.permute.xlu0 0
        %389 = vperm.xlu0 %388, %v371
        %v390 = vpop.permute.xlu0 %389
        %v393 = vsel %vm339, %v364, 0
        %v396 = vsel %vm339, %v365, 0
        %v399 = vsel %vm339, %v366, 0
        %v402 = vsel %vm339, %v367, 0
        %404 = vmatpush.msra.mxu0 0.0
        %405 = vmatpush.msra.mxu0 0.0
        %406 = vmatpush.msra.mxu0 0.0
        %407 = vmatpush.msra.mxu0 0.0
        %408 = vmatpush.msra.mxu0 0.0
        %409 = vmatpush.msra.mxu0 0.0
        %410 = vmatpush.msra.mxu0 0.0
        %411 = vmatpush.msra.mxu0 0.0
        %412 = vmatpush.msra.mxu0 0.0
        %413 = vmatpush.msra.mxu0 0.0
        %414 = vmatpush.msra.mxu0 0.0
        %415 = vmatpush.msra.mxu0 0.0
        %416 = vmatpush.msra.mxu0 0.0
        %417 = vmatpush.msra.mxu0 0.0
        %418 = vmatpush.msra.mxu0 %v331
        %419 = vmatpush.msra.mxu0 %v329
        %420 = vmatmul.f32.gmra.mxu0 %v393
        %v421 = vpop.f32.mrf.mxu0
        %v422 = vadd.f32 %v375, %v421
        %423 = vmatmul.f32.gmra.mxu0 %v396
        %v424 = vpop.f32.mrf.mxu0
        %v425 = vadd.f32 %v380, %v424
        %426 = vmatmul.f32.gmra.mxu0 %v399
        %v427 = vpop.f32.mrf.mxu0
        %v428 = vadd.f32 %v385, %v427
        %429 = vmatmul.f32.gmra.mxu0 %v402
        %v430 = vpop.f32.mrf.mxu0
        %v431 = vadd.f32 %v390, %v430
        %432 = vdwg.mxu0
        %433 = vmatpush.msra.mxu0 0.0
        %434 = vmatpush.msra.mxu0 0.0
        %435 = vmatpush.msra.mxu0 0.0
        %436 = vmatpush.msra.mxu0 0.0
        %437 = vmatpush.msra.mxu0 0.0
        %438 = vmatpush.msra.mxu0 0.0
        %439 = vmatpush.msra.mxu0 0.0
        %440 = vmatpush.msra.mxu0 0.0
        %441 = vmatpush.msra.mxu0 0.0
        %442 = vmatpush.msra.mxu0 0.0
        %443 = vmatpush.msra.mxu0 0.0
        %444 = vmatpush.msra.mxu0 0.0
        %445 = vmatpush.msra.mxu0 0.0
        %446 = vmatpush.msra.mxu0 0.0
        %447 = vmatpush.msra.mxu0 %v332
        %448 = vmatpush.msra.mxu0 %v330
        %449 = vmatmul.f32.gmra.mxu0 %v393
        %v450 = vpop.f32.mrf.mxu0
        %v451 = vadd.f32 %v375, %v450
        %452 = vmatmul.f32.gmra.mxu0 %v396
        %v453 = vpop.f32.mrf.mxu0
        %v454 = vadd.f32 %v380, %v453
        %455 = vmatmul.f32.gmra.mxu0 %v399
        %v456 = vpop.f32.mrf.mxu0
        %v457 = vadd.f32 %v385, %v456
        %458 = vmatmul.f32.gmra.mxu0 %v402
        %v459 = vpop.f32.mrf.mxu0
        %v460 = vadd.f32 %v390, %v459
        %461 = vdwg.mxu0
        %v462 = vld [vmem:[#allocation5] sm:$0xff]
        %v463 = vld [vmem:[#allocation5 + $0x8] sm:$0xff]
        %v464 = vld [vmem:[#allocation5 + $0x10] sm:$0xff]
        %v465 = vld [vmem:[#allocation5 + $0x18] sm:$0xff]
        %v466 = vmul.f32 %v363, %v462
        %v467 = vmul.f32 %v363, %v463
        %v468 = vmul.f32 %v363, %v464
        %v469 = vmul.f32 %v363, %v465
        %vm470 = vcmask 261120
        %v472 = vsel %vm470, %v466, 0
        %v475 = vsel %vm470, %v467, 0
        %v478 = vsel %vm470, %v468, 0
        %v481 = vsel %vm470, %v469, 0
        %483 = vmatpush.msra.mxu0 0.0
        %484 = vmatpush.msra.mxu0 0.0
        %485 = vmatpush.msra.mxu0 0.0
        %486 = vmatpush.msra.mxu0 0.0
        %487 = vmatpush.msra.mxu0 0.0
        %488 = vmatpush.msra.mxu0 0.0
        %489 = vmatpush.msra.mxu0 0.0
        %490 = vmatpush.msra.mxu0 0.0
        %491 = vmatpush.msra.mxu0 0.0
        %492 = vmatpush.msra.mxu0 0.0
        %493 = vmatpush.msra.mxu0 0.0
        %494 = vmatpush.msra.mxu0 0.0
        %495 = vmatpush.msra.mxu0 %v431
        %496 = vmatpush.msra.mxu0 %v428
        %497 = vmatpush.msra.mxu0 %v425
        %498 = vmatpush.msra.mxu0 %v422
        %499 = vmatmul.f32.gmra.mxu0 %v472
        %v500 = vpop.f32.mrf.mxu0
        %v501 = vadd.f32 0.0, %v500
        %502 = vmatmul.f32.gmra.mxu0 %v475
        %v503 = vpop.f32.mrf.mxu0
        %v504 = vadd.f32 0.0, %v503
        %505 = vmatmul.f32.gmra.mxu0 %v478
        %v506 = vpop.f32.mrf.mxu0
        %v507 = vadd.f32 0.0, %v506
        %508 = vmatmul.f32.gmra.mxu0 %v481
        %v509 = vpop.f32.mrf.mxu0
        %v510 = vadd.f32 0.0, %v509
        %511 = vdwg.mxu0
        %512 = vmatpush.msra.mxu0 0.0
        %513 = vmatpush.msra.mxu0 0.0
        %514 = vmatpush.msra.mxu0 0.0
        %515 = vmatpush.msra.mxu0 0.0
        %516 = vmatpush.msra.mxu0 0.0
        %517 = vmatpush.msra.mxu0 0.0
        %518 = vmatpush.msra.mxu0 0.0
        %519 = vmatpush.msra.mxu0 0.0
        %520 = vmatpush.msra.mxu0 0.0
        %521 = vmatpush.msra.mxu0 0.0
        %522 = vmatpush.msra.mxu0 0.0
        %523 = vmatpush.msra.mxu0 0.0
        %524 = vmatpush.msra.mxu0 %v460
        %525 = vmatpush.msra.mxu0 %v457
        %526 = vmatpush.msra.mxu0 %v454
        %527 = vmatpush.msra.mxu0 %v451
        %528 = vmatmul.f32.gmra.mxu0 %v472
        %v529 = vpop.f32.mrf.mxu0
        %v530 = vadd.f32 0.0, %v529
        %531 = vmatmul.f32.gmra.mxu0 %v475
        %v532 = vpop.f32.mrf.mxu0
        %v533 = vadd.f32 0.0, %v532
        %534 = vmatmul.f32.gmra.mxu0 %v478
        %v535 = vpop.f32.mrf.mxu0
        %v536 = vadd.f32 0.0, %v535
        %537 = vmatmul.f32.gmra.mxu0 %v481
        %v538 = vpop.f32.mrf.mxu0
        %v539 = vadd.f32 0.0, %v538
        %540 = vdwg.mxu0
        %v541 = vmax.f32 %v501, %v530
        %542 = vmax.xlane.f32.xlu0 %v541
        %v543 = vpop.xlane.xlu0 %542
        %v544 = vmax.f32 %v504, %v533
        %545 = vmax.xlane.f32.xlu0 %v544
        %v546 = vpop.xlane.xlu0 %545
        %v547 = vmax.f32 %v507, %v536
        %548 = vmax.xlane.f32.xlu0 %v547
        %v549 = vpop.xlane.xlu0 %548
        %v550 = vmax.f32 %v510, %v539
        %551 = vmax.xlane.f32.xlu0 %v550
        %v552 = vpop.xlane.xlu0 %551
        %v553 = vsub.f32 %v501, %v543
        %v554 = vsub.f32 %v530, %v543
        %v555 = vsub.f32 %v504, %v546
        %v556 = vsub.f32 %v533, %v546
        %v557 = vsub.f32 %v507, %v549
        %v558 = vsub.f32 %v536, %v549
        %v559 = vsub.f32 %v510, %v552
        %v560 = vsub.f32 %v539, %v552
        %v561 = vmul.f32 %v553, 1.442695
        %v562 = vpow.pop %v561
        %v563 = vmul.f32 %v554, 1.442695
        %v564 = vpow.pop %v563
        %v565 = vmul.f32 %v555, 1.442695
        %v566 = vpow.pop %v565
        %v567 = vmul.f32 %v556, 1.442695
        %v568 = vpow.pop %v567
        %v569 = vmul.f32 %v557, 1.442695
        %v570 = vpow.pop %v569
        %v571 = vmul.f32 %v558, 1.442695
        %v572 = vpow.pop %v571
        %v573 = vmul.f32 %v559, 1.442695
        %v574 = vpow.pop %v573
        %v575 = vmul.f32 %v560, 1.442695
        %v576 = vpow.pop %v575
        %v577 = vadd.f32 %v562, %v564
        %578 = vadd.xlane.f32.xlu0 %v577
        %v579 = vpop.xlane.xlu0 %578
        %v580 = vadd.f32 %v566, %v568
        %581 = vadd.xlane.f32.xlu0 %v580
        %v582 = vpop.xlane.xlu0 %581
        %v583 = vadd.f32 %v570, %v572
        %584 = vadd.xlane.f32.xlu0 %v583
        %v585 = vpop.xlane.xlu0 %584
        %v586 = vadd.f32 %v574, %v576
        %587 = vadd.xlane.f32.xlu0 %v586
        %v588 = vpop.xlane.xlu0 %587
        %v589 = vrcp.pop %v579
        %v590 = vmul.f32 %v579, %v589
        %v591 = vsub.f32 1.0, %v590
        %v592 = vmul.f32 %v589, %v591
        %v593 = vadd.f32 %v589, %v592
        %vm594 = vweird.f32 %v579
        %vm595 = vweird.f32 %v589
        %vm596 = vmor %vm594, %vm595
        %v597 = vsel %vm596, %v589, %v593
        %v598 = vand.u32 2147483647, %v579
        %vm599 = vcmp.eq.f32.partialorder %v598, 8.507059e+37
        %v600 = vand.u32 %v579, 2147483648
        %v601 = vor.u32 1.1754944e-38, %v600
        %v602 = vsel %vm599, %v601, %v597
        %v603 = vmul.f32 %v562, %v602
        %v604 = vmul.f32 %v564, %v602
        %v605 = vrcp.pop %v582
        %v606 = vmul.f32 %v582, %v605
        %v607 = vsub.f32 1.0, %v606
        %v608 = vmul.f32 %v605, %v607
        %v609 = vadd.f32 %v605, %v608
        %vm610 = vweird.f32 %v582
        %vm611 = vweird.f32 %v605
        %vm612 = vmor %vm610, %vm611
        %v613 = vsel %vm612, %v605, %v609
        %v614 = vand.u32 2147483647, %v582
        %vm615 = vcmp.eq.f32.partialorder %v614, 8.507059e+37
        %v616 = vand.u32 %v582, 2147483648
        %v617 = vor.u32 1.1754944e-38, %v616
        %v618 = vsel %vm615, %v617, %v613
        %v619 = vmul.f32 %v566, %v618
        %v620 = vmul.f32 %v568, %v618
        %v621 = vrcp.pop %v585
        %v622 = vmul.f32 %v585, %v621
        %v623 = vsub.f32 1.0, %v622
        %v624 = vmul.f32 %v621, %v623
        %v625 = vadd.f32 %v621, %v624
        %vm626 = vweird.f32 %v585
        %vm627 = vweird.f32 %v621
        %vm628 = vmor %vm626, %vm627
        %v629 = vsel %vm628, %v621, %v625
        %v630 = vand.u32 2147483647, %v585
        %vm631 = vcmp.eq.f32.partialorder %v630, 8.507059e+37
        %v632 = vand.u32 %v585, 2147483648
        %v633 = vor.u32 1.1754944e-38, %v632
        %v634 = vsel %vm631, %v633, %v629
        %v635 = vmul.f32 %v570, %v634
        %v636 = vmul.f32 %v572, %v634
        %v637 = vrcp.pop %v588
        %v638 = vmul.f32 %v588, %v637
        %v639 = vsub.f32 1.0, %v638
        %v640 = vmul.f32 %v637, %v639
        %v641 = vadd.f32 %v637, %v640
        %vm642 = vweird.f32 %v588
        %vm643 = vweird.f32 %v637
        %vm644 = vmor %vm642, %vm643
        %v645 = vsel %vm644, %v637, %v641
        %v646 = vand.u32 2147483647, %v588
        %vm647 = vcmp.eq.f32.partialorder %v646, 8.507059e+37
        %v648 = vand.u32 %v588, 2147483648
        %v649 = vor.u32 1.1754944e-38, %v648
        %v650 = vsel %vm647, %v649, %v645
        %v651 = vmul.f32 %v574, %v650
        %v652 = vmul.f32 %v576, %v650
        %653 = vst [vmem:[%s318] sm:$0xff] %v603
        %654 = vst [vmem:[%s318 + $0x8] sm:$0xff] %v604
        %655 = vst [vmem:[%s318 + $0x10] sm:$0xff] %v619
        %656 = vst [vmem:[%s318 + $0x18] sm:$0xff] %v620
        %657 = vst [vmem:[%s318 + $0x20] sm:$0xff] %v635
        %658 = vst [vmem:[%s318 + $0x28] sm:$0xff] %v636
        %659 = vst [vmem:[%s318 + $0x30] sm:$0xff] %v651
        %660 = vst [vmem:[%s318 + $0x38] sm:$0xff] %v652
        %s661 = sand.u32 %s188, 1
        %s662 = scalar_lea.sflag [#allocation4], %s661
        %s663 = sand.u32 %s188, 1
        %s664 = smul.addr %s663, 64
        %s665 = scalar_lea.vmem [#allocation7], %s664
        // Predicated region
        $region57: #{tpu_custom_call.1} parent=47 // pred_check
          %p666 = pneg %p198
        $region58: #{tpu_custom_call.1} parent=47 // pred_check_branch
          %668 = sbr.rel (%p666) target = $region60
        $region59: #{tpu_custom_call.1} parent=47 // pred_region
          %670 = vsyncadd %s662, 0
          %s671 = smul.addr %s23, 8
          %s672 = smul.addr %s671, 8
          %s673 = scalar_lea.hbm %s7, %s672
          %s675 = sshll.u32 %s665, 4
          %s676 = int_to_ptr.vmem [resolvable:$true] %s675
          %s677 = sshll.u32 %s673, 4
          %s678 = int_to_ptr.hbm [resolvable:$true] %s677
          %680 = dma.vmem_to_hbm [thread:$0]  %s676, 1024, %s678, %s662
        $region60: #{tpu_custom_call.1} parent=47 // pred_fallthru
          _
      $region48: #{tpu_custom_call.1} parent=5 // pred_fallthru
        _
      %p681 = scmp.le.s32.totalorder 2, %s18
      // Predicated region
      $region61: #{tpu_custom_call.1} parent=5 // pred_check
        %p682 = pneg %p681
      $region62: #{tpu_custom_call.1} parent=5 // pred_check_branch
        %684 = sbr.rel (%p682) target = $region64
      $region63: #{tpu_custom_call.1} parent=5 // pred_region
        %s685 = ssub.s32 %s18, 2
        // Predicated region
        $region65: #{tpu_custom_call.1} parent=63 // pred_check
          %p686 = pneg %p204
        $region66: #{tpu_custom_call.1} parent=63 // pred_check_branch
          %688 = sbr.rel (%p686) target = $region68
        $region67: #{tpu_custom_call.1} parent=63 // pred_region
          %s689 = sand.u32 %s189, 1
          %s690 = scalar_lea.sflag [#allocation4], %s689
          %s691 = sand.u32 %s189, 1
          %s692 = smul.addr %s691, 64
          %s693 = scalar_lea.vmem [#allocation7], %s692
          %695 = dma.done %s690, 1024
        $region68: #{tpu_custom_call.1} parent=63 // pred_fallthru
          _
      $region64: #{tpu_custom_call.1} parent=5 // pred_fallthru
        _
    $region6: #{tpu_custom_call.1} parent=1 // loop_footer
      %s22 = sadd.s32 1, %s18
    $region7: #{tpu_custom_call.1} parent=1 // loop_footer_branch
      %17 = sbr.rel target = $region3
    $region8: #{tpu_custom_call.1} parent=1 // loop_exit
      _
    %696 = vsyncpa [#allocation3], 1
    %s697 = scalar_lea.sflag [#allocation3], 1
    %698 = vsyncpa %s697, 1
    %699 = vsyncpa [#allocation6], 1
    %700 = vsyncpa [#allocation4], 1
    %s701 = scalar_lea.sflag [#allocation4], 1
    %702 = vsyncpa %s701, 1

</llo_original>
